<compile_context>
chip_gen: v5e
topology: v5e:2x2
jax: 0.10.0
libtpu: 0.0.40
codegen_flags: <defaults>
</compile_context>

<pallas_src>
import functools

import jax
import jax.numpy as jnp
from jax.experimental import pallas as pl
from jax.experimental.pallas import tpu as pltpu

LANES = 128


def actor_kernel(state_ref, eps_ref, w1_ref, b1_ref, w2_ref, b2_ref,
                 wh_ref, bh_ref, out_ref, *, in_dim, op):
    # ---- layer1 + ReLU on the VPU (K = in_dim is tiny; MXU would be <4% used).
    x = state_ref[...]                                    # [tb, in_dim] f32
    h1 = b1_ref[...] + x[:, 0:1] * w1_ref[0:1, :]         # [tb, hidden] f32
    for k in range(1, in_dim):
        h1 = h1 + x[:, k:k + 1] * w1_ref[k:k + 1, :]
    h1 = jnp.maximum(h1, 0.0)

    # ---- layer2 + ReLU (bf16 MXU inputs, f32 accumulate / elementwise).
    h2 = jnp.dot(h1.astype(jnp.bfloat16), w2_ref[...],
                 preferred_element_type=jnp.float32) + b2_ref[...]
    h2 = jnp.maximum(h2, 0.0)

    # ---- fused heads: lanes [0:op) = mu pre-act, lanes [op:2*op) = log_std.
    heads = jnp.dot(h2.astype(jnp.bfloat16), wh_ref[...],
                    preferred_element_type=jnp.float32) + bh_ref[...]
    mu = 2.0 * jnp.tanh(heads[:, :op])                    # vreg-aligned slice
    z = heads[:, op:]
    # std = exp(softplus(z)) = exp(log1p(exp(z))) = 1 + exp(z)
    std = 1.0 + jnp.exp(z)

    action = mu + std * eps_ref[...]        # eps broadcasts across the op lanes

    # Lane-dense output slab [action | mu | std]; every store is a full vreg.
    out_ref[:, 0 * op:1 * op] = action
    out_ref[:, 1 * op:2 * op] = mu
    out_ref[:, 2 * op:3 * op] = std


def pack_params(params):
    """One-time weight packing: fuse the two heads column-wise, pad head
    columns to 128 lanes so in-kernel slices are vreg-aligned, cast the MXU
    operands to bf16.  Call once; pass the result to actor_forward per step."""
    in_dim, hidden = params["w1"].shape
    out_dim = params["wmu"].shape[1]
    op = ((out_dim + LANES - 1) // LANES) * LANES

    wh = jnp.zeros((hidden, 2 * op), jnp.float32)
    wh = wh.at[:, :out_dim].set(params["wmu"])
    wh = wh.at[:, op:op + out_dim].set(params["wls"])
    bh = jnp.zeros((1, 2 * op), jnp.float32)
    bh = bh.at[:, :out_dim].set(params["bmu"])
    bh = bh.at[:, op:op + out_dim].set(params["bls"])

    return {
        "w1": params["w1"].astype(jnp.float32),   # VPU layer: stays f32
        "b1": params["b1"].astype(jnp.float32),
        "w2": params["w2"].astype(jnp.bfloat16),  # MXU layers: bf16
        "b2": params["b2"].astype(jnp.float32),
        "wh": wh.astype(jnp.bfloat16),
        "bh": bh,
        "in_dim": in_dim,
        "hidden": hidden,
        "out_dim": out_dim,
        "op": op,
    }


def _default_num_tiles():
    # v7x has 2 TensorCores (megacore shards "parallel" grid axes); earlier
    # chips have 1, where extra grid steps are pure serial-loop overhead for
    # a ~MFLOP-scale kernel.
    try:
        kind = jax.devices()[0].device_kind.lower()
        if "v7" in kind:
            return 2
    except Exception:
        pass
    return 1


def actor_forward(state, packed, eps, *, num_tiles=None, max_tile=1024):
    """state: [B, in_dim] f32; eps: [B, out_dim] f32 standard-normal noise.
    packed: output of pack_params().  Returns (action, mu, std), [B, out_dim]."""
    B, in_dim = state.shape
    hidden, out_dim, op = packed["hidden"], packed["out_dim"], packed["op"]
    assert in_dim == packed["in_dim"]

    if num_tiles is None:
        num_tiles = _default_num_tiles()

    # Batch tile: ceil(B / num_tiles), rounded to a sublane multiple, capped
    # so huge batches don't thrash regalloc on the f32 activations.
    tb = -(-B // num_tiles)
    tb = ((tb + 7) // 8) * 8
    tb = min(tb, max_tile)
    grid_n = -(-B // tb)
    b_pad = grid_n * tb

    # eps: broadcast in-kernel when out_dim == 1, otherwise pad lanes to op.
    if out_dim == 1:
        eps_in = eps
    else:
        eps_in = jnp.zeros((B, op), eps.dtype).at[:, :out_dim].set(eps)
    eps_cols = eps_in.shape[1]

    if b_pad != B:  # only the batch remainder gets padded (no K padding)
        state = jnp.pad(state, ((0, b_pad - B), (0, 0)))
        eps_in = jnp.pad(eps_in, ((0, b_pad - B), (0, 0)))

    def batch_spec(shape):
        return pl.BlockSpec(shape, lambda i: (i, 0))

    def resident_spec(shape):
        return pl.BlockSpec(shape, lambda i: (0, 0))

    weight_bytes = (packed["w1"].size * 4 + packed["b1"].size * 4 +
                    packed["w2"].size * 2 + packed["b2"].size * 4 +
                    packed["wh"].size * 2 + packed["bh"].size * 4)
    cost = pl.CostEstimate(
        flops=2 * b_pad * (in_dim * hidden + hidden * hidden + hidden * 2 * op),
        transcendentals=2 * b_pad * op,
        bytes_accessed=(b_pad * in_dim * 4 + b_pad * eps_cols * 4 +
                        b_pad * 3 * op * 4 + weight_bytes),
    )

    out = pl.pallas_call(
        functools.partial(actor_kernel, in_dim=in_dim, op=op),
        out_shape=jax.ShapeDtypeStruct((b_pad, 3 * op), jnp.float32),
        grid=(grid_n,),
        in_specs=[
            batch_spec((tb, in_dim)),             # state tile (native K)
            batch_spec((tb, eps_cols)),           # eps tile
            resident_spec((in_dim, hidden)),      # w1 (resident across steps)
            resident_spec((1, hidden)),           # b1
            resident_spec((hidden, hidden)),      # w2
            resident_spec((1, hidden)),           # b2
            resident_spec((hidden, 2 * op)),      # fused, lane-padded heads
            resident_spec((1, 2 * op)),           # fused head bias
        ],
        out_specs=batch_spec((tb, 3 * op)),
        compiler_params=pltpu.CompilerParams(
            dimension_semantics=("parallel",)),
        cost_estimate=cost,
    )(state, eps_in, packed["w1"], packed["b1"], packed["w2"], packed["b2"],
      packed["wh"], packed["bh"])

    action = out[:B, 0:out_dim]
    mu = out[:B, op:op + out_dim]
    std = out[:B, 2 * op:2 * op + out_dim]
    return action, mu, std


def init_params(key, in_dim, out_dim, hidden_dim=128, init_w=0.003):
    """Mirror the PyTorch module's init: layer1/layer2 use default nn.Linear
    init U[-1/sqrt(fan_in), 1/sqrt(fan_in)]; mu/log_std heads use U[-init_w, init_w]."""
    ks = jax.random.split(key, 8)

    def unif(k, shape, bound):
        return jax.random.uniform(k, shape, jnp.float32, -bound, bound)

    b1 = 1.0 / float(in_dim) ** 0.5
    b2 = 1.0 / float(hidden_dim) ** 0.5
    return {
        "w1":  unif(ks[0], (in_dim, hidden_dim), b1),
        "b1":  unif(ks[1], (1, hidden_dim), b1),
        "w2":  unif(ks[2], (hidden_dim, hidden_dim), b2),
        "b2":  unif(ks[3], (1, hidden_dim), b2),
        "wmu": unif(ks[4], (hidden_dim, out_dim), init_w),
        "bmu": unif(ks[5], (1, out_dim), init_w),
        "wls": unif(ks[6], (hidden_dim, out_dim), init_w),
        "bls": unif(ks[7], (1, out_dim), init_w),
    }


if __name__ == "__main__":
    key = jax.random.PRNGKey(0)
    k_param, k_state, k_eps = jax.random.split(key, 3)

    # Pendulum-v1: state dim 3, action dim 1, hidden 128.  Small batch.
    batch, in_dim, out_dim, hidden_dim = 64, 3, 1, 128

    params = init_params(k_param, in_dim, out_dim, hidden_dim)
    packed = pack_params(params)          # one-time weight packing

    state = jax.random.normal(k_state, (batch, in_dim), jnp.float32)
    eps = jax.random.normal(k_eps, (batch, out_dim), jnp.float32)

    action, mu, std = actor_forward(state, packed, eps)
    jax.block_until_ready((action, mu, std))

    # Plain-f32 JAX reference (kernel uses bf16 MXU inputs for layers 2/3).
    def ref(state, p, eps):
        h = jnp.maximum(state @ p["w1"] + p["b1"], 0.0)
        h = jnp.maximum(h @ p["w2"] + p["b2"], 0.0)
        mu_r = jnp.tanh(h @ p["wmu"] + p["bmu"]) * 2.0
        std_r = jnp.exp(jax.nn.softplus(h @ p["wls"] + p["bls"]))
        return mu_r + std_r * eps, mu_r, std_r

    a_r, mu_r, std_r = ref(state, params, eps)
    assert jnp.allclose(action, a_r, atol=5e-2, rtol=5e-2), "action mismatch"
    assert jnp.allclose(mu, mu_r, atol=5e-2, rtol=5e-2), "mu mismatch"
    assert jnp.allclose(std, std_r, atol=5e-2, rtol=5e-2), "std mismatch"

    print("KERNEL_OK")
</pallas_src>

<mosaic_0001>
module attributes {stable_mosaic.version = 11 : i64} {
  func.func @actor_kernel(%arg0: i32, %arg1: memref<64x3xf32, #tpu.memory_space<vmem>>, %arg2: memref<64x1xf32, #tpu.memory_space<vmem>>, %arg3: memref<3x128xf32, #tpu.memory_space<vmem>>, %arg4: memref<1x128xf32, #tpu.memory_space<vmem>>, %arg5: memref<128x128xbf16, #tpu.memory_space<vmem>>, %arg6: memref<1x128xf32, #tpu.memory_space<vmem>>, %arg7: memref<128x256xbf16, #tpu.memory_space<vmem>>, %arg8: memref<1x256xf32, #tpu.memory_space<vmem>>, %arg9: memref<64x384xf32, #tpu.memory_space<vmem>>) attributes {dimension_semantics = [#tpu.dimension_semantics<parallel>], iteration_bounds = array<i64: 1>, scalar_prefetch = 0 : i64, scratch_operands = 0 : i64, tpu.core_type = #tpu.core_type<tc>, window_params = [{transform_indices = @transform_0, window_bounds = array<i64: 64, 3>}, {transform_indices = @transform_1, window_bounds = array<i64: 64, 1>}, {pipeline_mode = #tpu.pipeline_mode<synchronous>, transform_indices = @transform_2, window_bounds = array<i64: 3, 128>}, {pipeline_mode = #tpu.pipeline_mode<synchronous>, transform_indices = @transform_3, window_bounds = array<i64: 1, 128>}, {pipeline_mode = #tpu.pipeline_mode<synchronous>, transform_indices = @transform_4, window_bounds = array<i64: 128, 128>}, {pipeline_mode = #tpu.pipeline_mode<synchronous>, transform_indices = @transform_5, window_bounds = array<i64: 1, 128>}, {pipeline_mode = #tpu.pipeline_mode<synchronous>, transform_indices = @transform_6, window_bounds = array<i64: 128, 256>}, {pipeline_mode = #tpu.pipeline_mode<synchronous>, transform_indices = @transform_7, window_bounds = array<i64: 1, 256>}, {transform_indices = @transform_8, window_bounds = array<i64: 64, 384>}]} {
    %c0 = arith.constant 0 : index
    %c0_0 = arith.constant 0 : index
    %0 = vector.load %arg1[%c0, %c0_0] : memref<64x3xf32, #tpu.memory_space<vmem>>, vector<64x3xf32>
    %c0_1 = arith.constant 0 : index
    %c0_2 = arith.constant 0 : index
    %1 = vector.load %arg4[%c0_1, %c0_2] : memref<1x128xf32, #tpu.memory_space<vmem>>, vector<1x128xf32>
    %2 = vector.extract_strided_slice %0 {offsets = [0, 0], sizes = [64, 1], strides = [1, 1]} : vector<64x3xf32> to vector<64x1xf32>
    %c0_3 = arith.constant 0 : index
    %c0_4 = arith.constant 0 : index
    %3 = vector.load %arg3[%c0_3, %c0_4] : memref<3x128xf32, #tpu.memory_space<vmem>>, vector<1x128xf32>
    %4 = vector.broadcast %2 : vector<64x1xf32> to vector<64x128xf32>
    %5 = vector.broadcast %3 : vector<1x128xf32> to vector<64x128xf32>
    %6 = arith.mulf %4, %5 : vector<64x128xf32>
    %7 = vector.broadcast %1 : vector<1x128xf32> to vector<64x128xf32>
    %8 = arith.addf %7, %6 : vector<64x128xf32>
    %9 = vector.extract_strided_slice %0 {offsets = [0, 1], sizes = [64, 1], strides = [1, 1]} : vector<64x3xf32> to vector<64x1xf32>
    %c1 = arith.constant 1 : index
    %c0_5 = arith.constant 0 : index
    %10 = vector.load %arg3[%c1, %c0_5] : memref<3x128xf32, #tpu.memory_space<vmem>>, vector<1x128xf32>
    %11 = vector.broadcast %9 : vector<64x1xf32> to vector<64x128xf32>
    %12 = vector.broadcast %10 : vector<1x128xf32> to vector<64x128xf32>
    %13 = arith.mulf %11, %12 : vector<64x128xf32>
    %14 = arith.addf %8, %13 : vector<64x128xf32>
    %15 = vector.extract_strided_slice %0 {offsets = [0, 2], sizes = [64, 1], strides = [1, 1]} : vector<64x3xf32> to vector<64x1xf32>
    %c2 = arith.constant 2 : index
    %c0_6 = arith.constant 0 : index
    %16 = vector.load %arg3[%c2, %c0_6] : memref<3x128xf32, #tpu.memory_space<vmem>>, vector<1x128xf32>
    %17 = vector.broadcast %15 : vector<64x1xf32> to vector<64x128xf32>
    %18 = vector.broadcast %16 : vector<1x128xf32> to vector<64x128xf32>
    %19 = arith.mulf %17, %18 : vector<64x128xf32>
    %20 = arith.addf %14, %19 : vector<64x128xf32>
    %cst = arith.constant 0.000000e+00 : f32
    %21 = vector.broadcast %cst : f32 to vector<64x128xf32>
    %22 = arith.maximumf %20, %21 : vector<64x128xf32>
    %23 = arith.truncf %22 : vector<64x128xf32> to vector<64x128xbf16>
    %c0_7 = arith.constant 0 : index
    %c0_8 = arith.constant 0 : index
    %24 = vector.load %arg5[%c0_7, %c0_8] : memref<128x128xbf16, #tpu.memory_space<vmem>>, vector<128x128xbf16>
    %cst_9 = arith.constant dense<0.000000e+00> : vector<64x128xf32>
    %25 = tpu.matmul %23, %24, %cst_9 {dimension_numbers = #tpu.dot_dimension_numbers<[1], [0], [0], [1], [0, 0, 1, 1], [], []>} : vector<64x128xbf16>, vector<128x128xbf16>, vector<64x128xf32> -> vector<64x128xf32>
    %c0_10 = arith.constant 0 : index
    %c0_11 = arith.constant 0 : index
    %26 = vector.load %arg6[%c0_10, %c0_11] : memref<1x128xf32, #tpu.memory_space<vmem>>, vector<1x128xf32>
    %27 = vector.broadcast %26 : vector<1x128xf32> to vector<64x128xf32>
    %28 = arith.addf %25, %27 : vector<64x128xf32>
    %cst_12 = arith.constant 0.000000e+00 : f32
    %29 = vector.broadcast %cst_12 : f32 to vector<64x128xf32>
    %30 = arith.maximumf %28, %29 : vector<64x128xf32>
    %31 = arith.truncf %30 : vector<64x128xf32> to vector<64x128xbf16>
    %c0_13 = arith.constant 0 : index
    %c0_14 = arith.constant 0 : index
    %32 = vector.load %arg7[%c0_13, %c0_14] : memref<128x256xbf16, #tpu.memory_space<vmem>>, vector<128x256xbf16>
    %cst_15 = arith.constant dense<0.000000e+00> : vector<64x256xf32>
    %33 = tpu.matmul %31, %32, %cst_15 {dimension_numbers = #tpu.dot_dimension_numbers<[1], [0], [0], [1], [0, 0, 1, 1], [], []>} : vector<64x128xbf16>, vector<128x256xbf16>, vector<64x256xf32> -> vector<64x256xf32>
    %c0_16 = arith.constant 0 : index
    %c0_17 = arith.constant 0 : index
    %34 = vector.load %arg8[%c0_16, %c0_17] : memref<1x256xf32, #tpu.memory_space<vmem>>, vector<1x256xf32>
    %35 = vector.broadcast %34 : vector<1x256xf32> to vector<64x256xf32>
    %36 = arith.addf %33, %35 : vector<64x256xf32>
    %37 = vector.extract_strided_slice %36 {offsets = [0, 0], sizes = [64, 128], strides = [1, 1]} : vector<64x256xf32> to vector<64x128xf32>
    %38 = math.tanh %37 : vector<64x128xf32>
    %cst_18 = arith.constant 2.000000e+00 : f32
    %39 = vector.broadcast %cst_18 : f32 to vector<64x128xf32>
    %40 = arith.mulf %39, %38 : vector<64x128xf32>
    %41 = vector.extract_strided_slice %36 {offsets = [0, 128], sizes = [64, 128], strides = [1, 1]} : vector<64x256xf32> to vector<64x128xf32>
    %42 = math.exp %41 : vector<64x128xf32>
    %cst_19 = arith.constant 1.000000e+00 : f32
    %43 = vector.broadcast %cst_19 : f32 to vector<64x128xf32>
    %44 = arith.addf %43, %42 : vector<64x128xf32>
    %c0_20 = arith.constant 0 : index
    %c0_21 = arith.constant 0 : index
    %45 = vector.load %arg2[%c0_20, %c0_21] : memref<64x1xf32, #tpu.memory_space<vmem>>, vector<64x1xf32>
    %46 = vector.broadcast %45 : vector<64x1xf32> to vector<64x128xf32>
    %47 = arith.mulf %44, %46 : vector<64x128xf32>
    %48 = arith.addf %40, %47 : vector<64x128xf32>
    %c0_22 = arith.constant 0 : index
    %c0_23 = arith.constant 0 : index
    %49 = vector.load %arg9[%c0_22, %c0_23] : memref<64x384xf32, #tpu.memory_space<vmem>>, vector<64x128xf32>
    tpu.vector_store %arg9[%c0_22, %c0_23], %48 {strides = array<i32>} : memref<64x384xf32, #tpu.memory_space<vmem>>, vector<64x128xf32>,
    %c0_24 = arith.constant 0 : index
    %c128 = arith.constant 128 : index
    %50 = vector.load %arg9[%c0_24, %c128] : memref<64x384xf32, #tpu.memory_space<vmem>>, vector<64x128xf32>
    tpu.vector_store %arg9[%c0_24, %c128], %40 {strides = array<i32>} : memref<64x384xf32, #tpu.memory_space<vmem>>, vector<64x128xf32>,
    %c0_25 = arith.constant 0 : index
    %c256 = arith.constant 256 : index
    %51 = vector.load %arg9[%c0_25, %c256] : memref<64x384xf32, #tpu.memory_space<vmem>>, vector<64x128xf32>
    tpu.vector_store %arg9[%c0_25, %c256], %44 {strides = array<i32>} : memref<64x384xf32, #tpu.memory_space<vmem>>, vector<64x128xf32>,
    return
  }
  func.func @transform_0(%arg0: i32) -> (i32, i32) {
    %c0_i32 = arith.constant 0 : i32
    %c0_i32_0 = arith.constant 0 : i32
    return %arg0, %c0_i32 : i32, i32
  }
  func.func @transform_1(%arg0: i32) -> (i32, i32) {
    %c0_i32 = arith.constant 0 : i32
    %c0_i32_0 = arith.constant 0 : i32
    return %arg0, %c0_i32 : i32, i32
  }
  func.func @transform_2(%arg0: i32) -> (i32, i32) {
    %c0_i32 = arith.constant 0 : i32
    %c0_i32_0 = arith.constant 0 : i32
    %c0_i32_1 = arith.constant 0 : i32
    return %c0_i32, %c0_i32_0 : i32, i32
  }
  func.func @transform_3(%arg0: i32) -> (i32, i32) {
    %c0_i32 = arith.constant 0 : i32
    %c0_i32_0 = arith.constant 0 : i32
    %c0_i32_1 = arith.constant 0 : i32
    return %c0_i32, %c0_i32_0 : i32, i32
  }
  func.func @transform_4(%arg0: i32) -> (i32, i32) {
    %c0_i32 = arith.constant 0 : i32
    %c0_i32_0 = arith.constant 0 : i32
    %c0_i32_1 = arith.constant 0 : i32
    return %c0_i32, %c0_i32_0 : i32, i32
  }
  func.func @transform_5(%arg0: i32) -> (i32, i32) {
    %c0_i32 = arith.constant 0 : i32
    %c0_i32_0 = arith.constant 0 : i32
    %c0_i32_1 = arith.constant 0 : i32
    return %c0_i32, %c0_i32_0 : i32, i32
  }
  func.func @transform_6(%arg0: i32) -> (i32, i32) {
    %c0_i32 = arith.constant 0 : i32
    %c0_i32_0 = arith.constant 0 : i32
    %c0_i32_1 = arith.constant 0 : i32
    return %c0_i32, %c0_i32_0 : i32, i32
  }
  func.func @transform_7(%arg0: i32) -> (i32, i32) {
    %c0_i32 = arith.constant 0 : i32
    %c0_i32_0 = arith.constant 0 : i32
    %c0_i32_1 = arith.constant 0 : i32
    return %c0_i32, %c0_i32_0 : i32, i32
  }
  func.func @transform_8(%arg0: i32) -> (i32, i32) {
    %c0_i32 = arith.constant 0 : i32
    %c0_i32_0 = arith.constant 0 : i32
    return %arg0, %c0_i32 : i32, i32
  }
}

</mosaic_0001>

<llo_original>
// kernel: tpu_custom_call.1
$region0: #{tpu_custom_call.1}
  #allocation0 [shape = 'u32[]', space=smem, size = 0x4, offset = 0x4, fixed_abs, tag = 'smem constant byte address 0x4 - core index']
  #allocation1 [shape = 'u32[72,128]{1,0:T(1,128)}', space=vmem, size = 0x9000, scoped, tag = 'internal scratch']
  %s0 = inlined_call_operand.vmem [shape: f32[64,3], index: 0, kind: input, shape index: {}]
  %s1 = inlined_call_operand.vmem [shape: f32[64,1], index: 1, kind: input, shape index: {}]
  %s2 = inlined_call_operand.vmem [shape: f32[3,128], index: 2, kind: input, shape index: {}]
  %s3 = inlined_call_operand.vmem [shape: f32[1,128], index: 3, kind: input, shape index: {}]
  %s4 = inlined_call_operand.hbm [shape: bf16[128,128], index: 4, kind: input, shape index: {}]
  %s5 = inlined_call_operand.vmem [shape: f32[1,128], index: 5, kind: input, shape index: {}]
  %s6 = inlined_call_operand.vmem [shape: bf16[128,256], index: 6, kind: input, shape index: {}]
  %s7 = inlined_call_operand.vmem [shape: f32[1,256], index: 7, kind: input, shape index: {}]
  %s8 = inlined_call_operand.hbm [shape: f32[64,384], index: 8, kind: output, shape index: {}]
  %s9 = sld [smem:[#allocation0]]
  $region46: #{tpu_custom_call.1} parent=0
    _
  %s11 = ssub.s32 1, %s9
  %s12 = scalar_select 0, %s11, %s9
  $region1: #{tpu_custom_call.1} parent=0
    #allocation2 [shape = 'u8[32768]{0}', space=vmem, size = 0x8000, scoped, tag = 'input window, operand 4, single buffered']
    #allocation3 [shape = 's32[1]{0}', space=sflag, size = 0x4, scoped, tag = 'scoped memory for tpu_custom_call.1']
    #allocation4 [shape = 's32[1]{0}', space=sflag, size = 0x4, scoped, tag = 'scoped memory for tpu_custom_call.1']
    #allocation5 [shape = 'u8[98304]{0}', space=vmem, size = 0x18000, scoped, tag = 'output window, operand 0, single buffered']
    %13 = vsyncpa [#allocation3], 0
    %14 = vsyncpa [#allocation4], 0
    // Predicated region
    $region2: #{tpu_custom_call.1} parent=1 // pred_check
      _
    $region3: #{tpu_custom_call.1} parent=1 // pred_check_branch
      %16 = sbr.rel (0) target = $region5
    $region4: #{tpu_custom_call.1} parent=1 // pred_region
      _
    $region5: #{tpu_custom_call.1} parent=1 // pred_fallthru
      _
    // Predicated region
    $region6: #{tpu_custom_call.1} parent=1 // pred_check
      _
    $region7: #{tpu_custom_call.1} parent=1 // pred_check_branch
      %18 = sbr.rel (0) target = $region9
    $region8: #{tpu_custom_call.1} parent=1 // pred_region
      _
    $region9: #{tpu_custom_call.1} parent=1 // pred_fallthru
      _
    // Predicated region
    $region10: #{tpu_custom_call.1} parent=1 // pred_check
      _
    $region11: #{tpu_custom_call.1} parent=1 // pred_check_branch
      %20 = sbr.rel (0) target = $region13
    $region12: #{tpu_custom_call.1} parent=1 // pred_region
      _
    $region13: #{tpu_custom_call.1} parent=1 // pred_fallthru
      _
    // Predicated region
    $region14: #{tpu_custom_call.1} parent=1 // pred_check
      _
    $region15: #{tpu_custom_call.1} parent=1 // pred_check_branch
      %22 = sbr.rel (0) target = $region17
    $region16: #{tpu_custom_call.1} parent=1 // pred_region
      _
    $region17: #{tpu_custom_call.1} parent=1 // pred_fallthru
      _
    // Predicated region
    $region18: #{tpu_custom_call.1} parent=1 // pred_check
      _
    $region19: #{tpu_custom_call.1} parent=1 // pred_check_branch
      %24 = sbr.rel (0) target = $region21
    $region20: #{tpu_custom_call.1} parent=1 // pred_region
      %26 = vsyncadd [#allocation3], 0
      %s27 = sshll.u32 %s4, 4
      %s28 = int_to_ptr.hbm [resolvable:$true] %s27
      %s29 = sshll.u32 [#allocation2], 4
      %s30 = int_to_ptr.vmem [resolvable:$true] %s29
      %35 = dma.hbm_to_vmem [thread:$0]  %s28, 1024, %s30, [#allocation3], 64, 64, 4
    $region21: #{tpu_custom_call.1} parent=1 // pred_fallthru
      _
    // Predicated region
    $region22: #{tpu_custom_call.1} parent=1 // pred_check
      _
    $region23: #{tpu_custom_call.1} parent=1 // pred_check_branch
      %37 = sbr.rel (0) target = $region25
    $region24: #{tpu_custom_call.1} parent=1 // pred_region
      _
    $region25: #{tpu_custom_call.1} parent=1 // pred_fallthru
      _
    // Predicated region
    $region26: #{tpu_custom_call.1} parent=1 // pred_check
      _
    $region27: #{tpu_custom_call.1} parent=1 // pred_check_branch
      %39 = sbr.rel (0) target = $region29
    $region28: #{tpu_custom_call.1} parent=1 // pred_region
      _
    $region29: #{tpu_custom_call.1} parent=1 // pred_fallthru
      _
    // Predicated region
    $region30: #{tpu_custom_call.1} parent=1 // pred_check
      _
    $region31: #{tpu_custom_call.1} parent=1 // pred_check_branch
      %41 = sbr.rel (0) target = $region33
    $region32: #{tpu_custom_call.1} parent=1 // pred_region
      _
    $region33: #{tpu_custom_call.1} parent=1 // pred_fallthru
      _
    // Predicated region
    $region34: #{tpu_custom_call.1} parent=1 // pred_check
      _
    $region35: #{tpu_custom_call.1} parent=1 // pred_check_branch
      %43 = sbr.rel (0) target = $region37
    $region36: #{tpu_custom_call.1} parent=1 // pred_region
      %45 = dma.done [#allocation3], 1024
    $region37: #{tpu_custom_call.1} parent=1 // pred_fallthru
      _
    %v46 = vld [vmem:[%s0] sm:$0xff]
    %v47 = vld [vmem:[%s0 + $0x8] sm:$0xff]
    %v48 = vld [vmem:[%s0 + $0x10] sm:$0xff]
    %v49 = vld [vmem:[%s0 + $0x18] sm:$0xff]
    %v50 = vld [vmem:[%s0 + $0x20] sm:$0xff]
    %v51 = vld [vmem:[%s0 + $0x28] sm:$0xff]
    %v52 = vld [vmem:[%s0 + $0x30] sm:$0xff]
    %v53 = vld [vmem:[%s0 + $0x38] sm:$0xff]
    %v54 = vld [vmem:[%s3] sm:$0x1]
    %v55 = vld [vmem:[%s2] sm:$0x1]
    %57 = vset.pattern.permute.xlu0 0
    %58 = vperm.xlu0 %57, %v46
    %v59 = vpop.permute.xlu0 %58
    %62 = vset.pattern.permute.xlu0 0
    %63 = vperm.xlu0 %62, %v47
    %v64 = vpop.permute.xlu0 %63
    %67 = vset.pattern.permute.xlu0 0
    %68 = vperm.xlu0 %67, %v48
    %v69 = vpop.permute.xlu0 %68
    %72 = vset.pattern.permute.xlu0 0
    %73 = vperm.xlu0 %72, %v49
    %v74 = vpop.permute.xlu0 %73
    %77 = vset.pattern.permute.xlu0 0
    %78 = vperm.xlu0 %77, %v50
    %v79 = vpop.permute.xlu0 %78
    %82 = vset.pattern.permute.xlu0 0
    %83 = vperm.xlu0 %82, %v51
    %v84 = vpop.permute.xlu0 %83
    %87 = vset.pattern.permute.xlu0 0
    %88 = vperm.xlu0 %87, %v52
    %v89 = vpop.permute.xlu0 %88
    %92 = vset.pattern.permute.xlu0 0
    %93 = vperm.xlu0 %92, %v53
    %v94 = vpop.permute.xlu0 %93
    %v96 = vperm.slane %v55, 0
    %v97 = vmul.f32 %v59, %v96
    %v98 = vmul.f32 %v64, %v96
    %v99 = vmul.f32 %v69, %v96
    %v100 = vmul.f32 %v74, %v96
    %v101 = vmul.f32 %v79, %v96
    %v102 = vmul.f32 %v84, %v96
    %v103 = vmul.f32 %v89, %v96
    %v104 = vmul.f32 %v94, %v96
    %v106 = vperm.slane %v54, 0
    %v108 = vadd.f32 %v106, %v97
    %v109 = vadd.f32 %v106, %v98
    %v110 = vadd.f32 %v106, %v99
    %v111 = vadd.f32 %v106, %v100
    %v112 = vadd.f32 %v106, %v101
    %v113 = vadd.f32 %v106, %v102
    %v114 = vadd.f32 %v106, %v103
    %v115 = vadd.f32 %v106, %v104
    %v116 = vld [vmem:[%s2 + $0x1] sm:$0x1]
    %117 = vset.pattern.permute.xlu0 1
    %118 = vperm.xlu0 %117, %v46
    %v119 = vpop.permute.xlu0 %118
    %121 = vset.pattern.permute.xlu0 1
    %122 = vperm.xlu0 %121, %v47
    %v123 = vpop.permute.xlu0 %122
    %125 = vset.pattern.permute.xlu0 1
    %126 = vperm.xlu0 %125, %v48
    %v127 = vpop.permute.xlu0 %126
    %129 = vset.pattern.permute.xlu0 1
    %130 = vperm.xlu0 %129, %v49
    %v131 = vpop.permute.xlu0 %130
    %133 = vset.pattern.permute.xlu0 1
    %134 = vperm.xlu0 %133, %v50
    %v135 = vpop.permute.xlu0 %134
    %137 = vset.pattern.permute.xlu0 1
    %138 = vperm.xlu0 %137, %v51
    %v139 = vpop.permute.xlu0 %138
    %141 = vset.pattern.permute.xlu0 1
    %142 = vperm.xlu0 %141, %v52
    %v143 = vpop.permute.xlu0 %142
    %145 = vset.pattern.permute.xlu0 1
    %146 = vperm.xlu0 %145, %v53
    %v147 = vpop.permute.xlu0 %146
    %v149 = vperm.slane %v116, 0
    %v150 = vmul.f32 %v119, %v149
    %v151 = vmul.f32 %v123, %v149
    %v152 = vmul.f32 %v127, %v149
    %v153 = vmul.f32 %v131, %v149
    %v154 = vmul.f32 %v135, %v149
    %v155 = vmul.f32 %v139, %v149
    %v156 = vmul.f32 %v143, %v149
    %v157 = vmul.f32 %v147, %v149
    %v158 = vadd.f32 %v108, %v150
    %v159 = vadd.f32 %v109, %v151
    %v160 = vadd.f32 %v110, %v152
    %v161 = vadd.f32 %v111, %v153
    %v162 = vadd.f32 %v112, %v154
    %v163 = vadd.f32 %v113, %v155
    %v164 = vadd.f32 %v114, %v156
    %v165 = vadd.f32 %v115, %v157
    %v166 = vld [vmem:[%s2 + $0x2] sm:$0x1]
    %167 = vset.pattern.permute.xlu0 2
    %168 = vperm.xlu0 %167, %v46
    %v169 = vpop.permute.xlu0 %168
    %171 = vset.pattern.permute.xlu0 2
    %172 = vperm.xlu0 %171, %v47
    %v173 = vpop.permute.xlu0 %172
    %175 = vset.pattern.permute.xlu0 2
    %176 = vperm.xlu0 %175, %v48
    %v177 = vpop.permute.xlu0 %176
    %179 = vset.pattern.permute.xlu0 2
    %180 = vperm.xlu0 %179, %v49
    %v181 = vpop.permute.xlu0 %180
    %183 = vset.pattern.permute.xlu0 2
    %184 = vperm.xlu0 %183, %v50
    %v185 = vpop.permute.xlu0 %184
    %187 = vset.pattern.permute.xlu0 2
    %188 = vperm.xlu0 %187, %v51
    %v189 = vpop.permute.xlu0 %188
    %191 = vset.pattern.permute.xlu0 2
    %192 = vperm.xlu0 %191, %v52
    %v193 = vpop.permute.xlu0 %192
    %195 = vset.pattern.permute.xlu0 2
    %196 = vperm.xlu0 %195, %v53
    %v197 = vpop.permute.xlu0 %196
    %v199 = vperm.slane %v166, 0
    %v200 = vmul.f32 %v169, %v199
    %v201 = vmul.f32 %v173, %v199
    %v202 = vmul.f32 %v177, %v199
    %v203 = vmul.f32 %v181, %v199
    %v204 = vmul.f32 %v185, %v199
    %v205 = vmul.f32 %v189, %v199
    %v206 = vmul.f32 %v193, %v199
    %v207 = vmul.f32 %v197, %v199
    %v208 = vadd.f32 %v158, %v200
    %v209 = vadd.f32 %v159, %v201
    %v210 = vadd.f32 %v160, %v202
    %v211 = vadd.f32 %v161, %v203
    %v212 = vadd.f32 %v162, %v204
    %v213 = vadd.f32 %v163, %v205
    %v214 = vadd.f32 %v164, %v206
    %v215 = vadd.f32 %v165, %v207
    %v216 = vmax.f32 %v208, 0.0
    %v217 = vmax.f32 %v209, 0.0
    %v218 = vmax.f32 %v210, 0.0
    %v219 = vmax.f32 %v211, 0.0
    %v220 = vmax.f32 %v212, 0.0
    %v221 = vmax.f32 %v213, 0.0
    %v222 = vmax.f32 %v214, 0.0
    %v223 = vmax.f32 %v215, 0.0
    %v224 = vpack.c.bf16 %v217, %v216
    %v225 = vpack.c.bf16 %v219, %v218
    %v226 = vpack.c.bf16 %v221, %v220
    %v227 = vpack.c.bf16 %v223, %v222
    %v228 = vld [vmem:[#allocation2] sm:$0xf]
    %v229 = vld [vmem:[#allocation2 + $0x4] sm:$0xf]
    %v230 = vld [vmem:[#allocation2 + $0x8] sm:$0xf]
    %v231 = vld [vmem:[#allocation2 + $0xc] sm:$0xf]
    %v232 = vld [vmem:[#allocation2 + $0x10] sm:$0xf]
    %v233 = vld [vmem:[#allocation2 + $0x14] sm:$0xf]
    %v234 = vld [vmem:[#allocation2 + $0x18] sm:$0xf]
    %v235 = vld [vmem:[#allocation2 + $0x1c] sm:$0xf]
    %v236 = vld [vmem:[#allocation2 + $0x20] sm:$0xf]
    %v237 = vld [vmem:[#allocation2 + $0x24] sm:$0xf]
    %v238 = vld [vmem:[#allocation2 + $0x28] sm:$0xf]
    %v239 = vld [vmem:[#allocation2 + $0x2c] sm:$0xf]
    %v240 = vld [vmem:[#allocation2 + $0x30] sm:$0xf]
    %v241 = vld [vmem:[#allocation2 + $0x34] sm:$0xf]
    %v242 = vld [vmem:[#allocation2 + $0x38] sm:$0xf]
    %v243 = vld [vmem:[#allocation2 + $0x3c] sm:$0xf]
    %v244 = vld [vmem:[%s5] sm:$0x1]
    %v246 = vperm.slane %v244, 0
    %v264 = vunpack.c.l.b16 %v228
    %v265 = vunpack.c.l.b16 %v229
    %v266 = vunpack.c.l.b16 %v230
    %v267 = vunpack.c.l.b16 %v231
    %v268 = vunpack.c.l.b16 %v232
    %v269 = vunpack.c.l.b16 %v233
    %v270 = vunpack.c.l.b16 %v234
    %v271 = vunpack.c.l.b16 %v235
    %v272 = vunpack.c.l.b16 %v236
    %v273 = vunpack.c.l.b16 %v237
    %v274 = vunpack.c.l.b16 %v238
    %v275 = vunpack.c.l.b16 %v239
    %v276 = vunpack.c.l.b16 %v240
    %v277 = vunpack.c.l.b16 %v241
    %v278 = vunpack.c.l.b16 %v242
    %v279 = vunpack.c.l.b16 %v243
    %v280 = vpack.c.b16 %v265, %v264
    %v281 = vpack.c.b16 %v267, %v266
    %v282 = vpack.c.b16 %v269, %v268
    %v283 = vpack.c.b16 %v271, %v270
    %v284 = vpack.c.b16 %v273, %v272
    %v285 = vpack.c.b16 %v275, %v274
    %v286 = vpack.c.b16 %v277, %v276
    %v287 = vpack.c.b16 %v279, %v278
    %296 = vmatpush.bf16.msra.mxu0 %v287
    %297 = vmatpush.bf16.msra.mxu0 %v286
    %298 = vmatpush.bf16.msra.mxu0 %v285
    %299 = vmatpush.bf16.msra.mxu0 %v284
    %300 = vmatpush.bf16.msra.mxu0 %v283
    %301 = vmatpush.bf16.msra.mxu0 %v282
    %302 = vmatpush.bf16.msra.mxu0 %v281
    %303 = vmatpush.bf16.msra.mxu0 %v280
    %304 = vmatmul.bf16.gmra.mxu0 %v224
    %v305 = vpop.f32.mrf.mxu0
    %v306 = vadd.f32 %v246, %v305
    %v307 = vpop.f32.mrf.mxu0
    %v308 = vadd.f32 %v246, %v307
    %309 = vmatmul.bf16.gmra.mxu0 %v225
    %v310 = vpop.f32.mrf.mxu0
    %v311 = vadd.f32 %v246, %v310
    %v312 = vpop.f32.mrf.mxu0
    %v313 = vadd.f32 %v246, %v312
    %314 = vmatmul.bf16.gmra.mxu0 %v226
    %v315 = vpop.f32.mrf.mxu0
    %v316 = vadd.f32 %v246, %v315
    %v317 = vpop.f32.mrf.mxu0
    %v318 = vadd.f32 %v246, %v317
    %319 = vmatmul.bf16.gmra.mxu0 %v227
    %v320 = vpop.f32.mrf.mxu0
    %v321 = vadd.f32 %v246, %v320
    %v322 = vpop.f32.mrf.mxu0
    %v323 = vadd.f32 %v246, %v322
    %324 = vdwg.mxu0
    %v325 = vmax.f32 %v306, 0.0
    %v326 = vmax.f32 %v308, 0.0
    %v327 = vmax.f32 %v311, 0.0
    %v328 = vmax.f32 %v313, 0.0
    %v329 = vmax.f32 %v316, 0.0
    %v330 = vmax.f32 %v318, 0.0
    %v331 = vmax.f32 %v321, 0.0
    %v332 = vmax.f32 %v323, 0.0
    %v333 = vpack.c.bf16 %v326, %v325
    %v334 = vpack.c.bf16 %v328, %v327
    %v335 = vpack.c.bf16 %v330, %v329
    %v336 = vpack.c.bf16 %v332, %v331
    %v337 = vld [vmem:[%s6] sm:$0xff]
    %v338 = vld [vmem:[%s6 + $0x8] sm:$0xff]
    %v339 = vld [vmem:[%s6 + $0x10] sm:$0xff]
    %v340 = vld [vmem:[%s6 + $0x18] sm:$0xff]
    %v341 = vld [vmem:[%s6 + $0x20] sm:$0xff]
    %v342 = vld [vmem:[%s6 + $0x28] sm:$0xff]
    %v343 = vld [vmem:[%s6 + $0x30] sm:$0xff]
    %v344 = vld [vmem:[%s6 + $0x38] sm:$0xff]
    %v345 = vld [vmem:[%s6 + $0x40] sm:$0xff]
    %v346 = vld [vmem:[%s6 + $0x48] sm:$0xff]
    %v347 = vld [vmem:[%s6 + $0x50] sm:$0xff]
    %v348 = vld [vmem:[%s6 + $0x58] sm:$0xff]
    %v349 = vld [vmem:[%s6 + $0x60] sm:$0xff]
    %v350 = vld [vmem:[%s6 + $0x68] sm:$0xff]
    %v351 = vld [vmem:[%s6 + $0x70] sm:$0xff]
    %v352 = vld [vmem:[%s6 + $0x78] sm:$0xff]
    %v353 = vld [vmem:[%s7] sm:$0x3]
    %v355 = vperm.slane %v353, 0
    %v356 = vperm.slane %v353, 1
    %v375 = vunpack.c.l.b16 %v337
    %v376 = vunpack.c.h.b16 %v337
    %v377 = vunpack.c.l.b16 %v338
    %v378 = vunpack.c.h.b16 %v338
    %v379 = vunpack.c.l.b16 %v339
    %v380 = vunpack.c.h.b16 %v339
    %v381 = vunpack.c.l.b16 %v340
    %v382 = vunpack.c.h.b16 %v340
    %v383 = vunpack.c.l.b16 %v341
    %v384 = vunpack.c.h.b16 %v341
    %v385 = vunpack.c.l.b16 %v342
    %v386 = vunpack.c.h.b16 %v342
    %v387 = vunpack.c.l.b16 %v343
    %v388 = vunpack.c.h.b16 %v343
    %v389 = vunpack.c.l.b16 %v344
    %v390 = vunpack.c.h.b16 %v344
    %v391 = vunpack.c.l.b16 %v345
    %v392 = vunpack.c.h.b16 %v345
    %v393 = vunpack.c.l.b16 %v346
    %v394 = vunpack.c.h.b16 %v346
    %v395 = vunpack.c.l.b16 %v347
    %v396 = vunpack.c.h.b16 %v347
    %v397 = vunpack.c.l.b16 %v348
    %v398 = vunpack.c.h.b16 %v348
    %v399 = vunpack.c.l.b16 %v349
    %v400 = vunpack.c.h.b16 %v349
    %v401 = vunpack.c.l.b16 %v350
    %v402 = vunpack.c.h.b16 %v350
    %v403 = vunpack.c.l.b16 %v351
    %v404 = vunpack.c.h.b16 %v351
    %v405 = vunpack.c.l.b16 %v352
    %v406 = vunpack.c.h.b16 %v352
    %v407 = vpack.c.b16 %v377, %v375
    %v408 = vpack.c.b16 %v378, %v376
    %v409 = vpack.c.b16 %v381, %v379
    %v410 = vpack.c.b16 %v382, %v380
    %v411 = vpack.c.b16 %v385, %v383
    %v412 = vpack.c.b16 %v386, %v384
    %v413 = vpack.c.b16 %v389, %v387
    %v414 = vpack.c.b16 %v390, %v388
    %v415 = vpack.c.b16 %v393, %v391
    %v416 = vpack.c.b16 %v394, %v392
    %v417 = vpack.c.b16 %v397, %v395
    %v418 = vpack.c.b16 %v398, %v396
    %v419 = vpack.c.b16 %v401, %v399
    %v420 = vpack.c.b16 %v402, %v400
    %v421 = vpack.c.b16 %v405, %v403
    %v422 = vpack.c.b16 %v406, %v404
    %439 = vmatpush.bf16.msra.mxu0 %v421
    %440 = vmatpush.bf16.msra.mxu0 %v419
    %441 = vmatpush.bf16.msra.mxu0 %v417
    %442 = vmatpush.bf16.msra.mxu0 %v415
    %443 = vmatpush.bf16.msra.mxu0 %v413
    %444 = vmatpush.bf16.msra.mxu0 %v411
    %445 = vmatpush.bf16.msra.mxu0 %v409
    %446 = vmatpush.bf16.msra.mxu0 %v407
    %447 = vmatmul.bf16.gmra.mxu0 %v333
    %v448 = vpop.f32.mrf.mxu0
    %v449 = vadd.f32 %v355, %v448
    %v450 = vpop.f32.mrf.mxu0
    %v451 = vadd.f32 %v355, %v450
    %452 = vmatmul.bf16.gmra.mxu0 %v334
    %v453 = vpop.f32.mrf.mxu0
    %v454 = vadd.f32 %v355, %v453
    %v455 = vpop.f32.mrf.mxu0
    %v456 = vadd.f32 %v355, %v455
    %457 = vmatmul.bf16.gmra.mxu0 %v335
    %v458 = vpop.f32.mrf.mxu0
    %v459 = vadd.f32 %v355, %v458
    %v460 = vpop.f32.mrf.mxu0
    %v461 = vadd.f32 %v355, %v460
    %462 = vmatmul.bf16.gmra.mxu0 %v336
    %v463 = vpop.f32.mrf.mxu0
    %v464 = vadd.f32 %v355, %v463
    %v465 = vpop.f32.mrf.mxu0
    %v466 = vadd.f32 %v355, %v465
    %467 = vdwg.mxu0
    %468 = vmatpush.bf16.msra.mxu0 %v422
    %469 = vmatpush.bf16.msra.mxu0 %v420
    %470 = vmatpush.bf16.msra.mxu0 %v418
    %471 = vmatpush.bf16.msra.mxu0 %v416
    %472 = vmatpush.bf16.msra.mxu0 %v414
    %473 = vmatpush.bf16.msra.mxu0 %v412
    %474 = vmatpush.bf16.msra.mxu0 %v410
    %475 = vmatpush.bf16.msra.mxu0 %v408
    %476 = vmatmul.bf16.gmra.mxu0 %v333
    %v477 = vpop.f32.mrf.mxu0
    %v478 = vadd.f32 %v356, %v477
    %v479 = vpop.f32.mrf.mxu0
    %v480 = vadd.f32 %v356, %v479
    %481 = vmatmul.bf16.gmra.mxu0 %v334
    %v482 = vpop.f32.mrf.mxu0
    %v483 = vadd.f32 %v356, %v482
    %v484 = vpop.f32.mrf.mxu0
    %v485 = vadd.f32 %v356, %v484
    %486 = vmatmul.bf16.gmra.mxu0 %v335
    %v487 = vpop.f32.mrf.mxu0
    %v488 = vadd.f32 %v356, %v487
    %v489 = vpop.f32.mrf.mxu0
    %v490 = vadd.f32 %v356, %v489
    %491 = vmatmul.bf16.gmra.mxu0 %v336
    %v492 = vpop.f32.mrf.mxu0
    %v493 = vadd.f32 %v356, %v492
    %v494 = vpop.f32.mrf.mxu0
    %v495 = vadd.f32 %v356, %v494
    %496 = vdwg.mxu0
    %v497 = vtanh.pop %v449
    %v498 = vtanh.pop %v451
    %v499 = vtanh.pop %v454
    %v500 = vtanh.pop %v456
    %v501 = vtanh.pop %v459
    %v502 = vtanh.pop %v461
    %v503 = vtanh.pop %v464
    %v504 = vtanh.pop %v466
    %v505 = vmul.f32 %v497, 2.0
    %v506 = vmul.f32 %v498, 2.0
    %v507 = vmul.f32 %v499, 2.0
    %v508 = vmul.f32 %v500, 2.0
    %v509 = vmul.f32 %v501, 2.0
    %v510 = vmul.f32 %v502, 2.0
    %v511 = vmul.f32 %v503, 2.0
    %v512 = vmul.f32 %v504, 2.0
    %v513 = vmul.f32 %v478, 1.442695
    %v514 = vpow.pop %v513
    %v515 = vmul.f32 %v480, 1.442695
    %v516 = vpow.pop %v515
    %v517 = vmul.f32 %v483, 1.442695
    %v518 = vpow.pop %v517
    %v519 = vmul.f32 %v485, 1.442695
    %v520 = vpow.pop %v519
    %v521 = vmul.f32 %v488, 1.442695
    %v522 = vpow.pop %v521
    %v523 = vmul.f32 %v490, 1.442695
    %v524 = vpow.pop %v523
    %v525 = vmul.f32 %v493, 1.442695
    %v526 = vpow.pop %v525
    %v527 = vmul.f32 %v495, 1.442695
    %v528 = vpow.pop %v527
    %v529 = vadd.f32 %v514, 1.0
    %v530 = vadd.f32 %v516, 1.0
    %v531 = vadd.f32 %v518, 1.0
    %v532 = vadd.f32 %v520, 1.0
    %v533 = vadd.f32 %v522, 1.0
    %v534 = vadd.f32 %v524, 1.0
    %v535 = vadd.f32 %v526, 1.0
    %v536 = vadd.f32 %v528, 1.0
    %v537 = vld [vmem:[%s1] sm:$0xff]
    %v538 = vld [vmem:[%s1 + $0x8] sm:$0xff]
    %v539 = vld [vmem:[%s1 + $0x10] sm:$0xff]
    %v540 = vld [vmem:[%s1 + $0x18] sm:$0xff]
    %v541 = vld [vmem:[%s1 + $0x20] sm:$0xff]
    %v542 = vld [vmem:[%s1 + $0x28] sm:$0xff]
    %v543 = vld [vmem:[%s1 + $0x30] sm:$0xff]
    %v544 = vld [vmem:[%s1 + $0x38] sm:$0xff]
    %546 = vset.pattern.permute.xlu0 0
    %547 = vperm.xlu0 %546, %v537
    %v548 = vpop.permute.xlu0 %547
    %551 = vset.pattern.permute.xlu0 0
    %552 = vperm.xlu0 %551, %v538
    %v553 = vpop.permute.xlu0 %552
    %556 = vset.pattern.permute.xlu0 0
    %557 = vperm.xlu0 %556, %v539
    %v558 = vpop.permute.xlu0 %557
    %561 = vset.pattern.permute.xlu0 0
    %562 = vperm.xlu0 %561, %v540
    %v563 = vpop.permute.xlu0 %562
    %566 = vset.pattern.permute.xlu0 0
    %567 = vperm.xlu0 %566, %v541
    %v568 = vpop.permute.xlu0 %567
    %571 = vset.pattern.permute.xlu0 0
    %572 = vperm.xlu0 %571, %v542
    %v573 = vpop.permute.xlu0 %572
    %576 = vset.pattern.permute.xlu0 0
    %577 = vperm.xlu0 %576, %v543
    %v578 = vpop.permute.xlu0 %577
    %581 = vset.pattern.permute.xlu0 0
    %582 = vperm.xlu0 %581, %v544
    %v583 = vpop.permute.xlu0 %582
    %v585 = vmul.f32 %v529, %v548
    %v586 = vmul.f32 %v530, %v553
    %v587 = vmul.f32 %v531, %v558
    %v588 = vmul.f32 %v532, %v563
    %v589 = vmul.f32 %v533, %v568
    %v590 = vmul.f32 %v534, %v573
    %v591 = vmul.f32 %v535, %v578
    %v592 = vmul.f32 %v536, %v583
    %v593 = vadd.f32 %v505, %v585
    %v594 = vadd.f32 %v506, %v586
    %v595 = vadd.f32 %v507, %v587
    %v596 = vadd.f32 %v508, %v588
    %v597 = vadd.f32 %v509, %v589
    %v598 = vadd.f32 %v510, %v590
    %v599 = vadd.f32 %v511, %v591
    %v600 = vadd.f32 %v512, %v592
    %601 = vst [vmem:[#allocation5] sm:$0xff] %v593
    %602 = vst [vmem:[#allocation5 + $0x18] sm:$0xff] %v594
    %603 = vst [vmem:[#allocation5 + $0x30] sm:$0xff] %v595
    %604 = vst [vmem:[#allocation5 + $0x48] sm:$0xff] %v596
    %605 = vst [vmem:[#allocation5 + $0x60] sm:$0xff] %v597
    %606 = vst [vmem:[#allocation5 + $0x78] sm:$0xff] %v598
    %607 = vst [vmem:[#allocation5 + $0x90] sm:$0xff] %v599
    %608 = vst [vmem:[#allocation5 + $0xa8] sm:$0xff] %v600
    %609 = vst [vmem:[#allocation5 + $0x8] sm:$0xff] %v505
    %610 = vst [vmem:[#allocation5 + $0x20] sm:$0xff] %v506
    %611 = vst [vmem:[#allocation5 + $0x38] sm:$0xff] %v507
    %612 = vst [vmem:[#allocation5 + $0x50] sm:$0xff] %v508
    %613 = vst [vmem:[#allocation5 + $0x68] sm:$0xff] %v509
    %614 = vst [vmem:[#allocation5 + $0x80] sm:$0xff] %v510
    %615 = vst [vmem:[#allocation5 + $0x98] sm:$0xff] %v511
    %616 = vst [vmem:[#allocation5 + $0xb0] sm:$0xff] %v512
    %617 = vst [vmem:[#allocation5 + $0x10] sm:$0xff] %v529
    %618 = vst [vmem:[#allocation5 + $0x28] sm:$0xff] %v530
    %619 = vst [vmem:[#allocation5 + $0x40] sm:$0xff] %v531
    %620 = vst [vmem:[#allocation5 + $0x58] sm:$0xff] %v532
    %621 = vst [vmem:[#allocation5 + $0x70] sm:$0xff] %v533
    %622 = vst [vmem:[#allocation5 + $0x88] sm:$0xff] %v534
    %623 = vst [vmem:[#allocation5 + $0xa0] sm:$0xff] %v535
    %624 = vst [vmem:[#allocation5 + $0xb8] sm:$0xff] %v536
    // Predicated region
    $region38: #{tpu_custom_call.1} parent=1 // pred_check
      _
    $region39: #{tpu_custom_call.1} parent=1 // pred_check_branch
      %626 = sbr.rel (0) target = $region41
    $region40: #{tpu_custom_call.1} parent=1 // pred_region
      %628 = vsyncadd [#allocation4], 0
      %s629 = sshll.u32 [#allocation5], 4
      %s630 = int_to_ptr.vmem [resolvable:$true] %s629
      %s631 = sshll.u32 %s8, 4
      %s632 = int_to_ptr.hbm [resolvable:$true] %s631
      %637 = dma.vmem_to_hbm [thread:$0]  %s630, 3072, %s632, [#allocation4], 384, 384, 24
    $region41: #{tpu_custom_call.1} parent=1 // pred_fallthru
      _
    // Predicated region
    $region42: #{tpu_custom_call.1} parent=1 // pred_check
      _
    $region43: #{tpu_custom_call.1} parent=1 // pred_check_branch
      %639 = sbr.rel (0) target = $region45
    $region44: #{tpu_custom_call.1} parent=1 // pred_region
      %641 = dma.done [#allocation4], 3072
    $region45: #{tpu_custom_call.1} parent=1 // pred_fallthru
      _
    %642 = vsyncpa [#allocation3], 1
    %643 = vsyncpa [#allocation4], 1

</llo_original>
